<compile_context>
chip_gen: v7x
topology: tpu7x:2x2x1
jax: 0.10.0
libtpu: 0.0.40
codegen_flags: <defaults>
</compile_context>

<pallas_src>
import jax
import jax.numpy as jnp
from jax import lax
from jax.experimental import pallas as pl
from jax.experimental.pallas import tpu as pltpu

_IN = 4
_HIDDEN = 64
_OUT = 2
_W2_PAD = 128     # head weight padded to a full 128-lane MXU tile (done once)
_SUB = 256        # in-kernel strip rows (vreg-pressure sweet spot)
_TB_MAX = 2048    # max rows per DMA tile / grid step


def _round_up(x, m):
    return ((x + m - 1) // m) * m


def _cdiv(a, b):
    return -(-a // b)


def _choose_tiling(batch):
    """Pick (b_pad, tb) with tb | b_pad, both multiples of 8, minimal padding."""
    b8 = _round_up(batch, 8)
    steps = _cdiv(b8, _TB_MAX)
    if steps == 1 and b8 >= 16:
        steps = 2                      # >=2 grid steps so both v7x TCs get work
    if steps > 1 and steps % 2:
        steps += 1                     # even step count balances the 2 TCs
    tb = _round_up(_cdiv(b8, steps), 8)
    return steps * tb, tb


def _make_kernel(tb):
    n_full, rem = divmod(tb, _SUB)     # static strip count + static remainder

    def kernel(s_ref, w1_ref, b1_ref, w2_ref, b2_ref, out_ref):
        # Params are VMEM-resident across the whole grid (constant index_map).
        w1 = w1_ref[...]                                   # (4, 64)
        b1 = b1_ref[...]                                   # (1, 64)
        w2 = w2_ref[...]                                   # (64, 128); cols 2..127 zero
        b2 = b2_ref[...]                                   # (1, 2)
        w1_rows = [w1[k:k + 1, :] for k in range(_IN)]     # hoisted out of the loops

        def strip(r0, rows):
            s = s_ref[pl.ds(r0, rows), :]                  # (rows, 4)
            # Hidden layer: 4 VPU broadcast-MACs (K=4 would waste the MXU).
            h = s[:, 0:1] * w1_rows[0] + b1
            for k in range(1, _IN):
                h = h + s[:, k:k + 1] * w1_rows[k]
            h = jnp.maximum(h, 0.0)                        # (rows, 64), ReLU
            # Head on the MXU; keep only the 2 real output lanes for writeback.
            o = jnp.dot(h, w2, preferred_element_type=jnp.float32)
            out_ref[pl.ds(r0, rows), :] = (o[:, :_OUT] + b2).astype(out_ref.dtype)

        if n_full:
            def body(t, carry):
                strip(pl.multiple_of(t * _SUB, _SUB), _SUB)
                return carry
            lax.fori_loop(0, n_full, body, 0, unroll=True)
        if rem:
            strip(n_full * _SUB, rem)                      # static remainder strip

    return kernel


def prepare_params(w1, b1, w2, b2):
    """One-time parameter prep (hoisted out of the per-call path).

    Weights are stored as (in_features, out_features) for x @ W.  The head
    weight is zero-padded to 128 columns so the MXU matmul uses a full lane
    tile; pad columns never reach the output (kernel slices the 2 real lanes).
    """
    w1 = jnp.asarray(w1, jnp.float32).reshape(_IN, _HIDDEN)
    b1 = jnp.asarray(b1, jnp.float32).reshape(1, _HIDDEN)
    w2 = jnp.asarray(w2, jnp.float32).reshape(_HIDDEN, _OUT)
    b2 = jnp.asarray(b2, jnp.float32).reshape(1, _OUT)
    w2p = jnp.pad(w2, ((0, 0), (0, _W2_PAD - _OUT)))
    return w1, b1, w2p, b2


def cartpole_a_rev_forward(s, w1, b1, w2p, b2):
    """CartpoleARev forward: ReLU(s @ W1 + b1) @ W2 + b2, tiled over batch.

    `w2p` is the (64, 128) zero-padded head weight produced by prepare_params.
    """
    batch = s.shape[0]
    if batch == 0:
        return jnp.zeros((0, _OUT), jnp.float32)

    b_pad, tb = _choose_tiling(batch)
    if b_pad != batch:
        s = jnp.pad(s, ((0, b_pad - batch), (0, 0)))

    grid = (b_pad // tb,)
    const = lambda shape: pl.BlockSpec(shape, lambda i: (0, 0))  # VMEM-resident

    out = pl.pallas_call(
        _make_kernel(tb),
        out_shape=jax.ShapeDtypeStruct((b_pad, _OUT), jnp.float32),
        grid=grid,
        in_specs=[
            pl.BlockSpec((tb, _IN), lambda i: (i, 0)),   # s tile (pipelined)
            const((_IN, _HIDDEN)),                        # w1 (resident)
            const((1, _HIDDEN)),                          # b1 (resident)
            const((_HIDDEN, _W2_PAD)),                    # w2 padded (resident)
            const((1, _OUT)),                             # b2 (resident)
        ],
        out_specs=pl.BlockSpec((tb, _OUT), lambda i: (i, 0)),
        compiler_params=pltpu.CompilerParams(
            dimension_semantics=("parallel",)),           # megacore split on v7x
    )(s, w1, b1, w2p, b2)

    # Pad rows (zeros in, garbage-free out) are sliced off; no column slice needed.
    return out if b_pad == batch else out[:batch]


def init_params(key):
    """Deterministic init matching torch.nn.Linear default U(-1/sqrt(fan_in), ...)."""
    k1, k2, k3, k4 = jax.random.split(key, 4)
    bound1 = 1.0 / jnp.sqrt(4.0)
    bound2 = 1.0 / jnp.sqrt(64.0)
    w1 = jax.random.uniform(k1, (_IN, _HIDDEN), jnp.float32, -bound1, bound1)
    b1 = jax.random.uniform(k2, (_HIDDEN,), jnp.float32, -bound1, bound1)
    w2 = jax.random.uniform(k3, (_HIDDEN, _OUT), jnp.float32, -bound2, bound2)
    b2 = jax.random.uniform(k4, (_OUT,), jnp.float32, -bound2, bound2)
    return w1, b1, w2, b2


def reference_forward(s, w1, b1, w2, b2):
    h = jnp.maximum(s @ w1 + b1[None, :], 0.0)
    return h @ w2 + b2[None, :]


if __name__ == "__main__":
    key = jax.random.PRNGKey(0)
    pkey, xkey = jax.random.split(key)
    w1, b1, w2, b2 = init_params(pkey)
    w1p, b1p, w2p, b2p = prepare_params(w1, b1, w2, b2)   # one-time head-weight pad

    # Exercise: tiny batch (grid=1), mid batch (fori strips + remainder),
    # and a non-multiple-of-8 batch (row padding + row slice).
    for batch in (8, 600, 1001):
        s = jax.random.normal(jax.random.fold_in(xkey, batch), (batch, _IN),
                              jnp.float32)
        out = cartpole_a_rev_forward(s, w1p, b1p, w2p, b2p)
        out = jax.block_until_ready(out)
        ref = reference_forward(s, w1, b1, w2, b2)
        assert out.shape == (batch, _OUT)
        assert jnp.allclose(out, ref, atol=1e-5, rtol=1e-5), \
            f"mismatch vs reference at batch={batch}"

    print("KERNEL_OK")
</pallas_src>

<mosaic_0001>
module attributes {stable_mosaic.version = 11 : i64} {
  func.func @kernel(%arg0: i32, %arg1: memref<8x4xf32, #tpu.memory_space<vmem>>, %arg2: memref<4x64xf32, #tpu.memory_space<vmem>>, %arg3: memref<1x64xf32, #tpu.memory_space<vmem>>, %arg4: memref<64x128xf32, #tpu.memory_space<vmem>>, %arg5: memref<1x2xf32, #tpu.memory_space<vmem>>, %arg6: memref<8x2xf32, #tpu.memory_space<vmem>>) attributes {dimension_semantics = [#tpu.dimension_semantics<parallel>], iteration_bounds = array<i64: 1>, scalar_prefetch = 0 : i64, scratch_operands = 0 : i64, tpu.core_type = #tpu.core_type<tc>, window_params = [{transform_indices = @transform_0, window_bounds = array<i64: 8, 4>}, {pipeline_mode = #tpu.pipeline_mode<synchronous>, transform_indices = @transform_1, window_bounds = array<i64: 4, 64>}, {pipeline_mode = #tpu.pipeline_mode<synchronous>, transform_indices = @transform_2, window_bounds = array<i64: 1, 64>}, {pipeline_mode = #tpu.pipeline_mode<synchronous>, transform_indices = @transform_3, window_bounds = array<i64: 64, 128>}, {pipeline_mode = #tpu.pipeline_mode<synchronous>, transform_indices = @transform_4, window_bounds = array<i64: 1, 2>}, {transform_indices = @transform_5, window_bounds = array<i64: 8, 2>}]} {
    %c0 = arith.constant 0 : index
    %c0_0 = arith.constant 0 : index
    %0 = vector.load %arg2[%c0, %c0_0] : memref<4x64xf32, #tpu.memory_space<vmem>>, vector<4x64xf32>
    %c0_1 = arith.constant 0 : index
    %c0_2 = arith.constant 0 : index
    %1 = vector.load %arg3[%c0_1, %c0_2] : memref<1x64xf32, #tpu.memory_space<vmem>>, vector<1x64xf32>
    %c0_3 = arith.constant 0 : index
    %c0_4 = arith.constant 0 : index
    %2 = vector.load %arg4[%c0_3, %c0_4] : memref<64x128xf32, #tpu.memory_space<vmem>>, vector<64x128xf32>
    %c0_5 = arith.constant 0 : index
    %c0_6 = arith.constant 0 : index
    %3 = vector.load %arg5[%c0_5, %c0_6] : memref<1x2xf32, #tpu.memory_space<vmem>>, vector<1x2xf32>
    %4 = vector.extract_strided_slice %0 {offsets = [0, 0], sizes = [1, 64], strides = [1, 1]} : vector<4x64xf32> to vector<1x64xf32>
    %5 = vector.extract_strided_slice %0 {offsets = [1, 0], sizes = [1, 64], strides = [1, 1]} : vector<4x64xf32> to vector<1x64xf32>
    %6 = vector.extract_strided_slice %0 {offsets = [2, 0], sizes = [1, 64], strides = [1, 1]} : vector<4x64xf32> to vector<1x64xf32>
    %7 = vector.extract_strided_slice %0 {offsets = [3, 0], sizes = [1, 64], strides = [1, 1]} : vector<4x64xf32> to vector<1x64xf32>
    %c0_7 = arith.constant 0 : index
    %c0_8 = arith.constant 0 : index
    %8 = vector.load %arg1[%c0_7, %c0_8] : memref<8x4xf32, #tpu.memory_space<vmem>>, vector<8x4xf32>
    %9 = vector.extract_strided_slice %8 {offsets = [0, 0], sizes = [8, 1], strides = [1, 1]} : vector<8x4xf32> to vector<8x1xf32>
    %10 = vector.broadcast %9 : vector<8x1xf32> to vector<8x64xf32>
    %11 = vector.broadcast %4 : vector<1x64xf32> to vector<8x64xf32>
    %12 = arith.mulf %10, %11 : vector<8x64xf32>
    %13 = vector.broadcast %1 : vector<1x64xf32> to vector<8x64xf32>
    %14 = arith.addf %12, %13 : vector<8x64xf32>
    %15 = vector.extract_strided_slice %8 {offsets = [0, 1], sizes = [8, 1], strides = [1, 1]} : vector<8x4xf32> to vector<8x1xf32>
    %16 = vector.broadcast %15 : vector<8x1xf32> to vector<8x64xf32>
    %17 = vector.broadcast %5 : vector<1x64xf32> to vector<8x64xf32>
    %18 = arith.mulf %16, %17 : vector<8x64xf32>
    %19 = arith.addf %14, %18 : vector<8x64xf32>
    %20 = vector.extract_strided_slice %8 {offsets = [0, 2], sizes = [8, 1], strides = [1, 1]} : vector<8x4xf32> to vector<8x1xf32>
    %21 = vector.broadcast %20 : vector<8x1xf32> to vector<8x64xf32>
    %22 = vector.broadcast %6 : vector<1x64xf32> to vector<8x64xf32>
    %23 = arith.mulf %21, %22 : vector<8x64xf32>
    %24 = arith.addf %19, %23 : vector<8x64xf32>
    %25 = vector.extract_strided_slice %8 {offsets = [0, 3], sizes = [8, 1], strides = [1, 1]} : vector<8x4xf32> to vector<8x1xf32>
    %26 = vector.broadcast %25 : vector<8x1xf32> to vector<8x64xf32>
    %27 = vector.broadcast %7 : vector<1x64xf32> to vector<8x64xf32>
    %28 = arith.mulf %26, %27 : vector<8x64xf32>
    %29 = arith.addf %24, %28 : vector<8x64xf32>
    %cst = arith.constant 0.000000e+00 : f32
    %30 = vector.broadcast %cst : f32 to vector<8x64xf32>
    %31 = arith.maximumf %29, %30 : vector<8x64xf32>
    %cst_9 = arith.constant dense<0.000000e+00> : vector<8x128xf32>
    %32 = tpu.matmul %31, %2, %cst_9 {dimension_numbers = #tpu.dot_dimension_numbers<[1], [0], [0], [1], [0, 0, 1, 1], [], []>} : vector<8x64xf32>, vector<64x128xf32>, vector<8x128xf32> -> vector<8x128xf32>
    %33 = vector.extract_strided_slice %32 {offsets = [0, 0], sizes = [8, 2], strides = [1, 1]} : vector<8x128xf32> to vector<8x2xf32>
    %34 = vector.broadcast %3 : vector<1x2xf32> to vector<8x2xf32>
    %35 = arith.addf %33, %34 : vector<8x2xf32>
    %c0_10 = arith.constant 0 : index
    %c0_11 = arith.constant 0 : index
    %36 = vector.load %arg6[%c0_10, %c0_11] : memref<8x2xf32, #tpu.memory_space<vmem>>, vector<8x2xf32>
    tpu.vector_store %arg6[%c0_10, %c0_11], %35 {strides = array<i32>} : memref<8x2xf32, #tpu.memory_space<vmem>>, vector<8x2xf32>,
    return
  }
  func.func @transform_0(%arg0: i32) -> (i32, i32) {
    %c0_i32 = arith.constant 0 : i32
    %c0_i32_0 = arith.constant 0 : i32
    return %arg0, %c0_i32 : i32, i32
  }
  func.func @transform_1(%arg0: i32) -> (i32, i32) {
    %c0_i32 = arith.constant 0 : i32
    %c0_i32_0 = arith.constant 0 : i32
    %c0_i32_1 = arith.constant 0 : i32
    return %c0_i32, %c0_i32_0 : i32, i32
  }
  func.func @transform_2(%arg0: i32) -> (i32, i32) {
    %c0_i32 = arith.constant 0 : i32
    %c0_i32_0 = arith.constant 0 : i32
    %c0_i32_1 = arith.constant 0 : i32
    return %c0_i32, %c0_i32_0 : i32, i32
  }
  func.func @transform_3(%arg0: i32) -> (i32, i32) {
    %c0_i32 = arith.constant 0 : i32
    %c0_i32_0 = arith.constant 0 : i32
    %c0_i32_1 = arith.constant 0 : i32
    return %c0_i32, %c0_i32_0 : i32, i32
  }
  func.func @transform_4(%arg0: i32) -> (i32, i32) {
    %c0_i32 = arith.constant 0 : i32
    %c0_i32_0 = arith.constant 0 : i32
    %c0_i32_1 = arith.constant 0 : i32
    return %c0_i32, %c0_i32_0 : i32, i32
  }
  func.func @transform_5(%arg0: i32) -> (i32, i32) {
    %c0_i32 = arith.constant 0 : i32
    %c0_i32_0 = arith.constant 0 : i32
    return %arg0, %c0_i32 : i32, i32
  }
}

</mosaic_0001>

<llo_original>
// kernel: tpu_custom_call.1
$region0: #{tpu_custom_call.1}
  #allocation0 [shape = 'u32[]', space=smem, size = 0x4, offset = 0x4, fixed_abs, tag = 'smem constant byte address 0x4 - core index']
  #allocation1 [shape = 'u32[144,128]{1,0:T(1,128)}', space=vmem, size = 0x12000, scoped, tag = 'internal scratch']
  %s0 = inlined_call_operand.vmem [shape: f32[8,4], index: 0, kind: input, shape index: {}]
  %s1 = inlined_call_operand.vmem [shape: f32[4,64], index: 1, kind: input, shape index: {}]
  %s2 = inlined_call_operand.vmem [shape: f32[1,64], index: 2, kind: input, shape index: {}]
  %s3 = inlined_call_operand.hbm [shape: f32[64,128], index: 3, kind: input, shape index: {}]
  %s4 = inlined_call_operand.vmem [shape: f32[1,2], index: 4, kind: input, shape index: {}]
  %s5 = inlined_call_operand.vmem [shape: f32[8,2], index: 5, kind: output, shape index: {}]
  %s6 = sld [smem:[#allocation0]]
  $region34: #{tpu_custom_call.1} parent=0
    _
  %s8 = ssub.s32 1, %s6
  %s9 = scalar_select 0, %s8, %s6
  $region1: #{tpu_custom_call.1} parent=0
    #allocation2 [shape = 'u8[32768]{0}', space=vmem, size = 0x8000, scoped, tag = 'input window, operand 3, single buffered']
    #allocation3 [shape = 's32[1]{0}', space=sflag, size = 0x4, scoped, tag = 'scoped memory for tpu_custom_call.1']
    %10 = vsyncpa [#allocation3], 0
    // Predicated region
    $region2: #{tpu_custom_call.1} parent=1 // pred_check
      _
    $region3: #{tpu_custom_call.1} parent=1 // pred_check_branch
      %12 = sbr.rel (0) target = $region5
    $region4: #{tpu_custom_call.1} parent=1 // pred_region
      _
    $region5: #{tpu_custom_call.1} parent=1 // pred_fallthru
      _
    // Predicated region
    $region6: #{tpu_custom_call.1} parent=1 // pred_check
      _
    $region7: #{tpu_custom_call.1} parent=1 // pred_check_branch
      %14 = sbr.rel (0) target = $region9
    $region8: #{tpu_custom_call.1} parent=1 // pred_region
      _
    $region9: #{tpu_custom_call.1} parent=1 // pred_fallthru
      _
    // Predicated region
    $region10: #{tpu_custom_call.1} parent=1 // pred_check
      _
    $region11: #{tpu_custom_call.1} parent=1 // pred_check_branch
      %16 = sbr.rel (0) target = $region13
    $region12: #{tpu_custom_call.1} parent=1 // pred_region
      _
    $region13: #{tpu_custom_call.1} parent=1 // pred_fallthru
      _
    // Predicated region
    $region14: #{tpu_custom_call.1} parent=1 // pred_check
      _
    $region15: #{tpu_custom_call.1} parent=1 // pred_check_branch
      %18 = sbr.rel (0) target = $region17
    $region16: #{tpu_custom_call.1} parent=1 // pred_region
      %s20 = ssub.s32 1024, 1024
      %21 = vsyncadd [#allocation3], %s20
      %s22 = sshll.u32 [#allocation2], 4
      %s23 = int_to_ptr.vmem [resolvable:$true] %s22
      %28 = dma.hbm_to_vmem [thread:$0]  %s3, 1024, %s23, [#allocation3], 128, 128, 8
    $region17: #{tpu_custom_call.1} parent=1 // pred_fallthru
      _
    // Predicated region
    $region18: #{tpu_custom_call.1} parent=1 // pred_check
      _
    $region19: #{tpu_custom_call.1} parent=1 // pred_check_branch
      %30 = sbr.rel (0) target = $region21
    $region20: #{tpu_custom_call.1} parent=1 // pred_region
      _
    $region21: #{tpu_custom_call.1} parent=1 // pred_fallthru
      _
    // Predicated region
    $region22: #{tpu_custom_call.1} parent=1 // pred_check
      _
    $region23: #{tpu_custom_call.1} parent=1 // pred_check_branch
      %32 = sbr.rel (0) target = $region25
    $region24: #{tpu_custom_call.1} parent=1 // pred_region
      %33 = dma.done [#allocation3], 1024
    $region25: #{tpu_custom_call.1} parent=1 // pred_fallthru
      _
    %v34 = vld [vmem:[%s1] sm:$0xf]
    %v35 = vld [vmem:[%s2] sm:$0x1]
    %v36 = vld [vmem:[#allocation2] sm:$0xff]
    %v37 = vld [vmem:[#allocation2 + $0x8] sm:$0xff]
    %v38 = vld [vmem:[#allocation2 + $0x10] sm:$0xff]
    %v39 = vld [vmem:[#allocation2 + $0x18] sm:$0xff]
    %v40 = vld [vmem:[#allocation2 + $0x20] sm:$0xff]
    %v41 = vld [vmem:[#allocation2 + $0x28] sm:$0xff]
    %v42 = vld [vmem:[#allocation2 + $0x30] sm:$0xff]
    %v43 = vld [vmem:[#allocation2 + $0x38] sm:$0xff]
    %v44 = vld [vmem:[%s4] sm:$0x1]
    %v45 = vld [vmem:[%s0] sm:$0xff]
    %47 = vset.pattern.permute.xlu0 0
    %48 = vperm.xlu0 %47, %v45
    %v49 = vpop.permute.xlu0 %48
    %v51 = vlaneseq
    %v52 = vshrl.u32 %v51, 7
    %v53 = vsub.s32 0, %v52
    %v54 = vrot.slane %v34, %v53
    %v55 = vmul.f32 %v49, %v54
    %v57 = vlaneseq
    %v58 = vshrl.u32 %v57, 7
    %v59 = vsub.s32 0, %v58
    %v60 = vrot.slane %v35, %v59
    %v62 = vadd.f32 %v55, %v60
    %63 = vset.pattern.permute.xlu0 1
    %64 = vperm.xlu0 %63, %v45
    %v65 = vpop.permute.xlu0 %64
    %v67 = vlaneseq
    %v68 = vshrl.u32 %v67, 7
    %v69 = vsub.s32 1, %v68
    %v70 = vrot.slane %v34, %v69
    %v71 = vmul.f32 %v65, %v70
    %v72 = vadd.f32 %v62, %v71
    %73 = vset.pattern.permute.xlu0 2
    %74 = vperm.xlu0 %73, %v45
    %v75 = vpop.permute.xlu0 %74
    %v77 = vlaneseq
    %v78 = vshrl.u32 %v77, 7
    %v79 = vsub.s32 2, %v78
    %v80 = vrot.slane %v34, %v79
    %v81 = vmul.f32 %v75, %v80
    %v82 = vadd.f32 %v72, %v81
    %83 = vset.pattern.permute.xlu0 3
    %84 = vperm.xlu0 %83, %v45
    %v85 = vpop.permute.xlu0 %84
    %v87 = vlaneseq
    %v88 = vshrl.u32 %v87, 7
    %v89 = vsub.s32 3, %v88
    %v90 = vrot.slane %v34, %v89
    %v91 = vmul.f32 %v85, %v90
    %v92 = vadd.f32 %v82, %v91
    %v93 = vmax.f32 %v92, 0.0
    %vm94 = vcmask 523264
    %v96 = vsel %vm94, %v93, 0
    %98 = vmatprep.subr.mxu0 0.0
    %99 = vmatpush1.msra.mxu0 %v36
    %100 = vmatprep.subr.mxu0 0.0
    %101 = vmatpush1.msra.mxu0 %v37
    %102 = vmatprep.subr.mxu0 0.0
    %103 = vmatpush1.msra.mxu0 %v38
    %104 = vmatprep.subr.mxu0 0.0
    %105 = vmatpush1.msra.mxu0 %v39
    %106 = vmatprep.subr.mxu0 0.0
    %107 = vmatpush1.msra.mxu0 %v40
    %108 = vmatprep.subr.mxu0 0.0
    %109 = vmatpush1.msra.mxu0 %v41
    %110 = vmatprep.subr.mxu0 0.0
    %111 = vmatpush1.msra.mxu0 %v42
    %112 = vmatprep.subr.mxu0 0.0
    %113 = vmatpush1.msra.mxu0 %v43
    %114 = vmatprep.subr.mxu0 0.0
    %115 = vmatpush1.msra.mxu0 0.0
    %116 = vmatprep.subr.mxu0 0.0
    %117 = vmatpush1.msra.mxu0 0.0
    %118 = vmatprep.subr.mxu0 0.0
    %119 = vmatpush1.msra.mxu0 0.0
    %120 = vmatprep.subr.mxu0 0.0
    %121 = vmatpush1.msra.mxu0 0.0
    %122 = vmatprep.subr.mxu0 0.0
    %123 = vmatpush1.msra.mxu0 0.0
    %124 = vmatprep.subr.mxu0 0.0
    %125 = vmatpush1.msra.mxu0 0.0
    %126 = vmatprep.subr.mxu0 0.0
    %127 = vmatpush1.msra.mxu0 0.0
    %128 = vmatprep.subr.mxu0 0.0
    %129 = vmatpush1.msra.mxu0 0.0
    %130 = vmatprep.subr.mxu0 0.0
    %131 = vmatpush1.msra.mxu0 0.0
    %132 = vmatprep.subr.mxu0 0.0
    %133 = vmatpush1.msra.mxu0 0.0
    %134 = vmatprep.subr.mxu0 0.0
    %135 = vmatpush1.msra.mxu0 0.0
    %136 = vmatprep.subr.mxu0 0.0
    %137 = vmatpush1.msra.mxu0 0.0
    %138 = vmatprep.subr.mxu0 0.0
    %139 = vmatpush1.msra.mxu0 0.0
    %140 = vmatprep.subr.mxu0 0.0
    %141 = vmatpush1.msra.mxu0 0.0
    %142 = vmatprep.subr.mxu0 0.0
    %143 = vmatpush1.msra.mxu0 0.0
    %144 = vmatprep.subr.mxu0 0.0
    %145 = vmatpush1.msra.mxu0 0.0
    %146 = vmatprep.subr.mxu0 0.0
    %147 = vmatpush1.msra.mxu0 0.0
    %148 = vmatprep.subr.mxu0 0.0
    %149 = vmatpush1.msra.mxu0 0.0
    %150 = vmatprep.subr.mxu0 0.0
    %151 = vmatpush1.msra.mxu0 0.0
    %152 = vmatprep.subr.mxu0 0.0
    %153 = vmatpush1.msra.mxu0 0.0
    %154 = vmatprep.subr.mxu0 0.0
    %155 = vmatpush1.msra.mxu0 0.0
    %156 = vmatprep.subr.mxu0 0.0
    %157 = vmatpush1.msra.mxu0 0.0
    %158 = vmatprep.subr.mxu0 0.0
    %159 = vmatpush1.msra.mxu0 0.0
    %160 = vmatprep.subr.mxu0 0.0
    %161 = vmatpush1.msra.mxu0 0.0
    %162 = vmatprep.mubr.f32.mxu0 0.0
    %163 = vmatmul.mubr.f32.gmra.mrb[0].mxu0 %v96
    %v164 = vpop.f32.mrb[0].mxu0
    %v165 = vadd.f32 0.0, %v164
    %v166 = vpop.f32.mrb[0].mxu0
    %167 = vdwg.mxu0
    %v169 = vlaneseq
    %v170 = vshrl.u32 %v169, 7
    %v171 = vsub.s32 0, %v170
    %v172 = vrot.slane %v44, %v171
    %v174 = vadd.f32 %v165, %v172
    %vm175 = vcmask 15360
    %176 = vst.msk [vmem:[%s5] sm:$0xff] %vm175, %v174
    // Predicated region
    $region26: #{tpu_custom_call.1} parent=1 // pred_check
      _
    $region27: #{tpu_custom_call.1} parent=1 // pred_check_branch
      %178 = sbr.rel (0) target = $region29
    $region28: #{tpu_custom_call.1} parent=1 // pred_region
      _
    $region29: #{tpu_custom_call.1} parent=1 // pred_fallthru
      _
    // Predicated region
    $region30: #{tpu_custom_call.1} parent=1 // pred_check
      _
    $region31: #{tpu_custom_call.1} parent=1 // pred_check_branch
      %180 = sbr.rel (0) target = $region33
    $region32: #{tpu_custom_call.1} parent=1 // pred_region
      _
    $region33: #{tpu_custom_call.1} parent=1 // pred_fallthru
      _
    %181 = vsyncpa [#allocation3], 1

</llo_original>
